<compile_context>
chip_gen: v6e
topology: v6e:2x2x1
jax: 0.10.0
libtpu: 0.0.40
codegen_flags: <defaults>
</compile_context>

<pallas_src>
import functools

import jax
import jax.numpy as jnp
from jax.experimental import pallas as pl
from jax.experimental.pallas import tpu as pltpu

TINY_NUMBER = 1e-6
_LANES = 128
_MAX_TILE_ROWS = 1024  # (1024, 128) f32 = 512 KiB per input per buffer


def _round_up(x, m):
    return ((x + m - 1) // m) * m


# ---------------------------------------------------------------------------
# Kernels: streaming sum of squared differences (optionally masked) over
# lane-dense [rows, 128] f32 tiles, accumulated in an (8, 128) VMEM vreg.
# ---------------------------------------------------------------------------
def _masked_sumsq_kernel(pred_ref, gt_ref, mask_ref, out_ref, acc_ref):
    i = pl.program_id(0)

    @pl.when(i == 0)
    def _():
        acc_ref[...] = jnp.zeros_like(acc_ref)

    d = pred_ref[...] - gt_ref[...]              # [tile_rows, 128]
    sq = d * d * mask_ref[...]
    # Fold the tile down to (8, 128) with pure VPU adds (no XLU, no SMEM dep).
    acc_ref[...] += jnp.sum(sq.reshape(-1, 8, _LANES), axis=0)

    @pl.when(i == pl.num_programs(0) - 1)
    def _():
        out_ref[0, 0] = jnp.sum(acc_ref[...])    # single final XLU reduce


def _sumsq_kernel(pred_ref, gt_ref, out_ref, acc_ref):
    i = pl.program_id(0)

    @pl.when(i == 0)
    def _():
        acc_ref[...] = jnp.zeros_like(acc_ref)

    d = pred_ref[...] - gt_ref[...]
    acc_ref[...] += jnp.sum((d * d).reshape(-1, 8, _LANES), axis=0)

    @pl.when(i == pl.num_programs(0) - 1)
    def _():
        out_ref[0, 0] = jnp.sum(acc_ref[...])


# ---------------------------------------------------------------------------
# Wrapper: flatten -> pad (zeros) -> [rows, 128] lane-dense -> pallas reduction
# ---------------------------------------------------------------------------
def _to_lane_dense(x_flat, rows_pad):
    total = x_flat.shape[0]
    pad = rows_pad * _LANES - total
    if pad:
        x_flat = jnp.pad(x_flat, (0, pad))
    return x_flat.reshape(rows_pad, _LANES)


def _reduce_sumsq(pred, gt, mask_bcast):
    """sum((pred - gt)^2 [* mask]) over all elements via a lane-dense Pallas reduction."""
    total = pred.size
    rows = max(1, (total + _LANES - 1) // _LANES)
    tile_rows = min(_MAX_TILE_ROWS, _round_up(rows, 8))
    rows_pad = _round_up(rows, tile_rows)
    grid = (rows_pad // tile_rows,)

    pred2d = _to_lane_dense(pred.astype(jnp.float32).reshape(-1), rows_pad)
    gt2d = _to_lane_dense(gt.astype(jnp.float32).reshape(-1), rows_pad)

    spec = pl.BlockSpec((tile_rows, _LANES), lambda i: (i, 0))

    if mask_bcast is not None:
        mask2d = _to_lane_dense(mask_bcast.astype(jnp.float32).reshape(-1), rows_pad)
        kernel = _masked_sumsq_kernel
        operands = (pred2d, gt2d, mask2d)
        in_specs = [spec, spec, spec]
    else:
        kernel = _sumsq_kernel
        operands = (pred2d, gt2d)
        in_specs = [spec, spec]

    out = pl.pallas_call(
        kernel,
        out_shape=jax.ShapeDtypeStruct((1, 1), jnp.float32),
        grid_spec=pltpu.PrefetchScalarGridSpec(
            num_scalar_prefetch=0,
            grid=grid,
            in_specs=in_specs,
            out_specs=pl.BlockSpec(memory_space=pltpu.SMEM),
            scratch_shapes=[pltpu.VMEM((8, _LANES), jnp.float32)],
        ),
        compiler_params=pltpu.CompilerParams(
            dimension_semantics=("arbitrary",)),   # sequential reduction axis
    )(*operands)
    return out[0, 0]


@jax.jit
def _img2mse_masked(pred, gt, mask):
    pred = pred.astype(jnp.float32)
    gt = gt.astype(jnp.float32)
    mask = mask.astype(jnp.float32)
    c = pred.shape[-1]
    mask_bcast = jnp.broadcast_to(mask[..., None], pred.shape)
    sumsq = _reduce_sumsq(pred, gt, mask_bcast)
    # sum(mask) is a trivially cheap reduce; keep it in plain jnp (fused by XLA).
    denom = jnp.sum(mask) * jnp.float32(c) + jnp.float32(TINY_NUMBER)
    return sumsq / denom


@jax.jit
def _img2mse_unmasked(pred, gt):
    pred = pred.astype(jnp.float32)
    gt = gt.astype(jnp.float32)
    sumsq = _reduce_sumsq(pred, gt, None)
    return sumsq / jnp.float32(pred.size)     # exact torch.mean semantics


def img2mse(pred_rgb, gt_rgb, mask=None):
    if mask is None:
        return _img2mse_unmasked(pred_rgb, gt_rgb)
    return _img2mse_masked(pred_rgb, gt_rgb, mask)


class Criterion:
    """JAX/Pallas port of ibrnet Criterion (masked MSE photometric loss)."""

    def __call__(self, outputs, ray_batch, reg_out, true_reg, scalars_to_log):
        pred_rgb = outputs['rgb']
        pred_mask = outputs['mask'].astype(jnp.float32) if 'mask' in outputs else None
        gt_rgb = ray_batch['rgb']
        loss = img2mse(pred_rgb, gt_rgb, pred_mask)
        return loss, scalars_to_log


if __name__ == "__main__":
    key = jax.random.PRNGKey(0)
    k1, k2, k3, k4, k5, k6 = jax.random.split(key, 6)

    # --- small case (matches typical ray-batch layout [N_rays, 3]) ---
    n_rays, c = 16, 3
    pred_rgb = jax.random.uniform(k1, (n_rays, c), dtype=jnp.float32)
    gt_rgb = jax.random.uniform(k2, (n_rays, c), dtype=jnp.float32)
    mask = (jax.random.uniform(k3, (n_rays,)) > 0.3).astype(jnp.float32)

    criterion = Criterion()
    loss, _ = criterion({'rgb': pred_rgb, 'mask': mask}, {'rgb': gt_rgb},
                        None, None, {})
    loss = jax.block_until_ready(loss)

    diff = (pred_rgb - gt_rgb) ** 2 * mask[:, None]
    ref = jnp.sum(diff) / (jnp.sum(mask) * c + TINY_NUMBER)
    assert jnp.allclose(loss, ref, rtol=1e-5, atol=1e-6), (loss, ref)

    # --- no-mask path ---
    loss_nm, _ = criterion({'rgb': pred_rgb}, {'rgb': gt_rgb}, None, None, {})
    loss_nm = jax.block_until_ready(loss_nm)
    ref_nm = jnp.mean((pred_rgb - gt_rgb) ** 2)
    assert jnp.allclose(loss_nm, ref_nm, rtol=1e-5, atol=1e-6), (loss_nm, ref_nm)

    # --- larger case: exercises multi-step grid + ragged tail padding ---
    n_big = 50000
    pred_b = jax.random.uniform(k4, (n_big, c), dtype=jnp.float32)
    gt_b = jax.random.uniform(k5, (n_big, c), dtype=jnp.float32)
    mask_b = (jax.random.uniform(k6, (n_big,)) > 0.5).astype(jnp.float32)

    loss_b, _ = criterion({'rgb': pred_b, 'mask': mask_b}, {'rgb': gt_b},
                          None, None, {})
    loss_b = jax.block_until_ready(loss_b)
    ref_b = jnp.sum((pred_b - gt_b) ** 2 * mask_b[:, None]) / (jnp.sum(mask_b) * c + TINY_NUMBER)
    assert jnp.allclose(loss_b, ref_b, rtol=1e-5, atol=1e-6), (loss_b, ref_b)

    loss_bnm, _ = criterion({'rgb': pred_b}, {'rgb': gt_b}, None, None, {})
    loss_bnm = jax.block_until_ready(loss_bnm)
    ref_bnm = jnp.mean((pred_b - gt_b) ** 2)
    assert jnp.allclose(loss_bnm, ref_bnm, rtol=1e-5, atol=1e-6), (loss_bnm, ref_bnm)

    print("KERNEL_OK")
</pallas_src>

<mosaic_0001>
module attributes {stable_mosaic.version = 11 : i64} {
  func.func @_masked_sumsq_kernel(%arg0: i32, %arg1: memref<8x128xf32, #tpu.memory_space<vmem>>, %arg2: memref<8x128xf32, #tpu.memory_space<vmem>>, %arg3: memref<8x128xf32, #tpu.memory_space<vmem>>, %arg4: memref<1x1xf32, #tpu.memory_space<smem>>, %arg5: memref<8x128xf32, #tpu.memory_space<vmem>>) attributes {dimension_semantics = [#tpu.dimension_semantics<arbitrary>], iteration_bounds = array<i64: 1>, scalar_prefetch = 0 : i64, scratch_operands = 1 : i64, tpu.core_type = #tpu.core_type<tc>, window_params = [{transform_indices = @transform_0, window_bounds = array<i64: 8, 128>}, {transform_indices = @transform_1, window_bounds = array<i64: 8, 128>}, {transform_indices = @transform_2, window_bounds = array<i64: 8, 128>}, {transform_indices = @transform_3, window_bounds = array<i64: 1, 1>}]} {
    %c0_i32 = arith.constant 0 : i32
    %0 = arith.cmpi eq, %arg0, %c0_i32 : i32
    %1 = arith.extui %0 : i1 to i32
    %c0_i32_0 = arith.constant 0 : i32
    %2 = arith.cmpi ne, %1, %c0_i32_0 : i32
    scf.if %2 {
      %cst_12 = arith.constant 0.000000e+00 : f32
      %17 = vector.broadcast %cst_12 : f32 to vector<8x128xf32>
      %c0_13 = arith.constant 0 : index
      %c0_14 = arith.constant 0 : index
      %18 = vector.load %arg5[%c0_13, %c0_14] : memref<8x128xf32, #tpu.memory_space<vmem>>, vector<8x128xf32>
      tpu.vector_store %arg5[%c0_13, %c0_14], %17 {strides = array<i32>} : memref<8x128xf32, #tpu.memory_space<vmem>>, vector<8x128xf32>,
    } else {
    }
    %c0 = arith.constant 0 : index
    %c0_1 = arith.constant 0 : index
    %3 = vector.load %arg1[%c0, %c0_1] : memref<8x128xf32, #tpu.memory_space<vmem>>, vector<8x128xf32>
    %c0_2 = arith.constant 0 : index
    %c0_3 = arith.constant 0 : index
    %4 = vector.load %arg2[%c0_2, %c0_3] : memref<8x128xf32, #tpu.memory_space<vmem>>, vector<8x128xf32>
    %5 = arith.subf %3, %4 : vector<8x128xf32>
    %6 = arith.mulf %5, %5 : vector<8x128xf32>
    %c0_4 = arith.constant 0 : index
    %c0_5 = arith.constant 0 : index
    %7 = vector.load %arg3[%c0_4, %c0_5] : memref<8x128xf32, #tpu.memory_space<vmem>>, vector<8x128xf32>
    %8 = arith.mulf %6, %7 : vector<8x128xf32>
    %c0_6 = arith.constant 0 : index
    %c0_7 = arith.constant 0 : index
    %9 = vector.load %arg5[%c0_6, %c0_7] : memref<8x128xf32, #tpu.memory_space<vmem>>, vector<8x128xf32>
    %10 = vector.shape_cast %8 : vector<8x128xf32> to vector<1x8x128xf32>
    %cst = arith.constant dense<0.000000e+00> : vector<8x128xf32>
    %11 = vector.multi_reduction <add>, %10, %cst [0] : vector<1x8x128xf32> to vector<8x128xf32>
    %12 = arith.addf %9, %11 : vector<8x128xf32>
    %c0_8 = arith.constant 0 : index
    %c0_9 = arith.constant 0 : index
    %13 = vector.load %arg5[%c0_8, %c0_9] : memref<8x128xf32, #tpu.memory_space<vmem>>, vector<8x128xf32>
    tpu.vector_store %arg5[%c0_8, %c0_9], %12 {strides = array<i32>} : memref<8x128xf32, #tpu.memory_space<vmem>>, vector<8x128xf32>,
    %c0_i32_10 = arith.constant 0 : i32
    %14 = arith.cmpi eq, %arg0, %c0_i32_10 : i32
    %15 = arith.extui %14 : i1 to i32
    %c0_i32_11 = arith.constant 0 : i32
    %16 = arith.cmpi ne, %15, %c0_i32_11 : i32
    scf.if %16 {
      %c0_12 = arith.constant 0 : index
      %c0_13 = arith.constant 0 : index
      %17 = vector.load %arg5[%c0_12, %c0_13] : memref<8x128xf32, #tpu.memory_space<vmem>>, vector<8x128xf32>
      %18 = vector.shape_cast %17 : vector<8x128xf32> to vector<1x8x128xf32>
      %cst_14 = arith.constant dense<0.000000e+00> : vector<1xf32>
      %19 = vector.multi_reduction <add>, %18, %cst_14 [1, 2] : vector<1x8x128xf32> to vector<1xf32>
      %20 = vector.shape_cast %19 : vector<1xf32> to vector<1x1x1xf32>
      %21 = vector.extract %20[0, 0, 0] : f32 from vector<1x1x1xf32>
      %c0_15 = arith.constant 0 : index
      %c0_16 = arith.constant 0 : index
      %22 = memref.load %arg4[%c0_15, %c0_16] : memref<1x1xf32, #tpu.memory_space<smem>>
      memref.store %21, %arg4[%c0_15, %c0_16] : memref<1x1xf32, #tpu.memory_space<smem>>
    } else {
    }
    return
  }
  func.func @transform_0(%arg0: i32) -> (i32, i32) {
    %c0_i32 = arith.constant 0 : i32
    %c0_i32_0 = arith.constant 0 : i32
    return %arg0, %c0_i32 : i32, i32
  }
  func.func @transform_1(%arg0: i32) -> (i32, i32) {
    %c0_i32 = arith.constant 0 : i32
    %c0_i32_0 = arith.constant 0 : i32
    return %arg0, %c0_i32 : i32, i32
  }
  func.func @transform_2(%arg0: i32) -> (i32, i32) {
    %c0_i32 = arith.constant 0 : i32
    %c0_i32_0 = arith.constant 0 : i32
    return %arg0, %c0_i32 : i32, i32
  }
  func.func @transform_3(%arg0: i32) -> (i32, i32) {
    %c0_i32 = arith.constant 0 : i32
    %c0_i32_0 = arith.constant 0 : i32
    %c0_i32_1 = arith.constant 0 : i32
    return %c0_i32, %c0_i32_0 : i32, i32
  }
}

</mosaic_0001>

<llo_original>
// kernel: _img2mse_masked.1
$region0: #{_img2mse_masked.1}
  #allocation0 [shape = 'u32[]', space=smem, size = 0x4, offset = 0x4, fixed_abs, tag = 'smem constant byte address 0x4 - core index']
  #allocation1 [shape = 'u32[144,128]{1,0:T(1,128)}', space=vmem, size = 0x12000, scoped, tag = 'internal scratch']
  #allocation2 [shape = 'f32[8,128]{1,0:T(8,128)}', space=vmem, size = 0x1000, scoped, tag = 'scratch operand']
  %s0 = inlined_call_operand.vmem [shape: f32[8,128], index: 0, kind: input, shape index: {}]
  %s1 = inlined_call_operand.vmem [shape: f32[8,128], index: 1, kind: input, shape index: {}]
  %s2 = inlined_call_operand.vmem [shape: f32[8,128], index: 2, kind: input, shape index: {}]
  %s3 = inlined_call_operand.hbm [shape: f32[1,1], index: 3, kind: output, shape index: {}]
  %s4 = sld [smem:[#allocation0]]
  $region30: #{_img2mse_masked.1} parent=0
    _
  %s6 = ssub.s32 1, %s4
  %s7 = scalar_select 0, %s6, %s4
  $region1: #{_img2mse_masked.1} parent=0
    #allocation3 [shape = 'u8[512]{0}', space=smem, size = 0x200, scoped, tag = 'output window, operand 0, single buffered']
    #allocation4 [shape = 's32[1]{0}', space=sflag, size = 0x4, scoped, tag = 'scoped memory for _img2mse_masked.1']
    %8 = vsyncpa [#allocation4], 0
    // Predicated region
    $region2: #{_img2mse_masked.1} parent=1 // pred_check
      _
    $region3: #{_img2mse_masked.1} parent=1 // pred_check_branch
      %10 = sbr.rel (0) target = $region5
    $region4: #{_img2mse_masked.1} parent=1 // pred_region
      _
    $region5: #{_img2mse_masked.1} parent=1 // pred_fallthru
      _
    // Predicated region
    $region6: #{_img2mse_masked.1} parent=1 // pred_check
      _
    $region7: #{_img2mse_masked.1} parent=1 // pred_check_branch
      %12 = sbr.rel (0) target = $region9
    $region8: #{_img2mse_masked.1} parent=1 // pred_region
      _
    $region9: #{_img2mse_masked.1} parent=1 // pred_fallthru
      _
    // Predicated region
    $region10: #{_img2mse_masked.1} parent=1 // pred_check
      _
    $region11: #{_img2mse_masked.1} parent=1 // pred_check_branch
      %14 = sbr.rel (0) target = $region13
    $region12: #{_img2mse_masked.1} parent=1 // pred_region
      _
    $region13: #{_img2mse_masked.1} parent=1 // pred_fallthru
      _
    %p15 = scmp.eq.s32.totalorder 0, 0
    // Predicated region
    $region14: #{_img2mse_masked.1} parent=1 // pred_check
      %p16 = pneg %p15
    $region15: #{_img2mse_masked.1} parent=1 // pred_check_branch
      %18 = sbr.rel (%p16) target = $region17
    $region16: #{_img2mse_masked.1} parent=1 // pred_region
      %19 = vst [vmem:[#allocation2] sm:$0xff] 0.0
    $region17: #{_img2mse_masked.1} parent=1 // pred_fallthru
      _
    %v20 = vld [vmem:[%s0] sm:$0xff]
    %v21 = vld [vmem:[%s1] sm:$0xff]
    %v22 = vsub.f32 %v20, %v21
    %v23 = vmul.f32 %v22, %v22
    %v24 = vld [vmem:[%s2] sm:$0xff]
    %v25 = vmul.f32 %v23, %v24
    %v26 = vld [vmem:[#allocation2] sm:$0xff]
    %v27 = vadd.f32 %v25, 0.0
    %v28 = vadd.f32 %v26, %v27
    %29 = vst [vmem:[#allocation2] sm:$0xff] %v28
    // Predicated region
    $region18: #{_img2mse_masked.1} parent=1 // pred_check
      %p30 = pneg %p15
    $region19: #{_img2mse_masked.1} parent=1 // pred_check_branch
      %32 = sbr.rel (%p30) target = $region21
    $region20: #{_img2mse_masked.1} parent=1 // pred_region
      %v33 = vld [vmem:[#allocation2] sm:$0xff]
      %34 = vadd.xlane.f32.xlu0 %v33
      %v35 = vpop.xlane.xlu0 %34
      %v36 = vrot.slane %v35, 4
      %v37 = vadd.f32 %v35, %v36
      %v38 = vrot.slane %v37, 2
      %v39 = vadd.f32 %v37, %v38
      %v40 = vrot.slane %v39, 1
      %v41 = vadd.f32 %v39, %v40
      %s42 = vtos %v41
      %s43 = scalar_lea.smem [#allocation3], 0
      %44 = sst [smem:[%s43]] %s42
    $region21: #{_img2mse_masked.1} parent=1 // pred_fallthru
      _
    // Predicated region
    $region22: #{_img2mse_masked.1} parent=1 // pred_check
      _
    $region23: #{_img2mse_masked.1} parent=1 // pred_check_branch
      %46 = sbr.rel (0) target = $region25
    $region24: #{_img2mse_masked.1} parent=1 // pred_region
      %s48 = ssub.s32 16, 16
      %49 = vsyncadd [#allocation4], %s48
      %52 = dma.smem_to_hbm [#allocation3], 16, %s3, [#allocation4]
    $region25: #{_img2mse_masked.1} parent=1 // pred_fallthru
      _
    // Predicated region
    $region26: #{_img2mse_masked.1} parent=1 // pred_check
      _
    $region27: #{_img2mse_masked.1} parent=1 // pred_check_branch
      %54 = sbr.rel (0) target = $region29
    $region28: #{_img2mse_masked.1} parent=1 // pred_region
      %55 = dma.done [#allocation4], 16
    $region29: #{_img2mse_masked.1} parent=1 // pred_fallthru
      _
    %56 = sfence
    %57 = vsyncpa [#allocation4], 1

</llo_original>
